<compile_context>
chip_gen: v6e
topology: v6e:2x2x1
jax: 0.10.0
libtpu: 0.0.40
codegen_flags: <defaults>
</compile_context>

<pallas_src>
import jax
import jax.numpy as jnp
from jax.experimental import pallas as pl
from jax.experimental.pallas import tpu as pltpu


def _pairwise_concat_kernel(x_ref, y_ref, o_ref):
    # x_ref: (1, t1, Cx), y_ref: (1, t2, Cy), o_ref: (1, t1, t2, Cx+Cy)
    t1, cx = x_ref.shape[1], x_ref.shape[2]
    t2, cy = y_ref.shape[1], y_ref.shape[2]

    x = x_ref[0].astype(o_ref.dtype)   # (t1, Cx), explicit output-dtype cast
    y = y_ref[0].astype(o_ref.dtype)   # (t2, Cy)

    # Two disjoint stores -- no lane-axis concatenate, no materialized
    # full-tile temporary beyond the broadcast vregs.
    # x half: constant along t2 (sublane broadcast of each row).
    o_ref[0, :, :, :cx] = jnp.broadcast_to(x[:, None, :], (t1, t2, cx))
    # y half: constant along t1 (outer axis) -- same (t2, Cy) vregs reused.
    o_ref[0, :, :, cx:] = jnp.broadcast_to(y[None, :, :], (t1, t2, cy))


def _round_up(v, m):
    return ((v + m - 1) // m) * m


def _cdiv(a, b):
    return (a + b - 1) // b


def _candidate_tiles(dim, cap=1024):
    """Legal tile sizes for a (..., t, C) block: multiples of 8 (sublane rule)
    or the full dim.  Non-dividing tiles are allowed (Pallas masks the partial
    boundary block)."""
    cands = {dim}
    for t in range(8, min(dim, cap) + 1, 8):
        cands.add(t)
    return sorted(cands, reverse=True)


def _pick_tiles(d1, d2, cx, cy, x_it, y_it, o_it, budget):
    """Pick (t1, t2) minimizing grid steps (then padding waste) subject to the
    double-buffered VMEM footprint fitting `budget`."""
    c_pad = _round_up(cx + cy, 128)   # last dim pads to 128 lanes in VMEM
    cx_pad = _round_up(cx, 128)
    cy_pad = _round_up(cy, 128)

    def vmem_bytes(t1, t2):
        out_b = 2 * t1 * _round_up(t2, 8) * c_pad * o_it            # 2x buffered
        in_b = (2 * _round_up(t1, 8) * cx_pad * x_it
                + 2 * _round_up(t2, 8) * cy_pad * y_it)
        return out_b + in_b

    best, best_key = None, None
    for t1 in _candidate_tiles(d1):
        for t2 in _candidate_tiles(d2):
            if vmem_bytes(t1, t2) > budget:
                continue
            steps = _cdiv(d1, t1) * _cdiv(d2, t2)
            waste = _cdiv(d1, t1) * t1 * _cdiv(d2, t2) * t2 - d1 * d2
            key = (-steps, -waste, t2, t1)
            if best_key is None or key > best_key:
                best_key, best = key, (t1, t2)
    if best is None:
        # Absolute fallback: smallest legal tiles.
        best = (min(d1, 8), min(d2, 8))
    return best


def pairwise_concat(x, y, *, vmem_budget_bytes=20 * 1024 * 1024):
    """x: (B, d1, Cx), y: (B, d2, Cy) -> (B, d1, d2, Cx+Cy)."""
    assert x.ndim == 3 and y.ndim == 3 and x.shape[0] == y.shape[0]
    b, d1, cx = x.shape
    _, d2, cy = y.shape
    c = cx + cy

    out_dtype = jnp.result_type(x.dtype, y.dtype)
    out_itemsize = jnp.dtype(out_dtype).itemsize
    t1, t2 = _pick_tiles(
        d1, d2, cx, cy,
        jnp.dtype(x.dtype).itemsize, jnp.dtype(y.dtype).itemsize,
        out_itemsize, vmem_budget_bytes,
    )
    grid = (b, _cdiv(d1, t1), _cdiv(d2, t2))

    bytes_accessed = (x.size * x.dtype.itemsize
                      + y.size * y.dtype.itemsize
                      + b * d1 * d2 * c * out_itemsize)
    cost = pl.CostEstimate(flops=0, transcendentals=0,
                           bytes_accessed=bytes_accessed)

    vmem_limit = max(32 * 1024 * 1024, vmem_budget_bytes + (8 << 20))

    return pl.pallas_call(
        _pairwise_concat_kernel,
        out_shape=jax.ShapeDtypeStruct((b, d1, d2, c), out_dtype),
        grid_spec=pltpu.PrefetchScalarGridSpec(
            num_scalar_prefetch=0,
            grid=grid,
            in_specs=[
                # x tile constant along inner i2 axis -> stays resident in VMEM.
                pl.BlockSpec((1, t1, cx), lambda i, i1, i2: (i, i1, 0)),
                pl.BlockSpec((1, t2, cy), lambda i, i1, i2: (i, i2, 0)),
            ],
            out_specs=pl.BlockSpec((1, t1, t2, c),
                                   lambda i, i1, i2: (i, i1, i2, 0)),
        ),
        compiler_params=pltpu.CompilerParams(
            # Every grid point writes a disjoint output block (no reduction
            # axis) -> fully parallel; lets v7x shard across its 2 TCs.
            dimension_semantics=("parallel", "parallel", "parallel"),
            vmem_limit_bytes=vmem_limit,
        ),
        cost_estimate=cost,
    )(x, y)


def pairwise_concat_ref(x, y):
    b, d1, cx = x.shape
    _, d2, cy = y.shape
    xb = jnp.broadcast_to(x[:, :, None, :], (b, d1, d2, cx))
    yb = jnp.broadcast_to(y[:, None, :, :], (b, d1, d2, cy))
    return jnp.concatenate([xb, yb], axis=-1)


if __name__ == "__main__":
    key = jax.random.PRNGKey(0)
    kx, ky = jax.random.split(key)

    # Test 1: same dtype, square d1/d2 (single output block per batch).
    B, D1, D2, CX, CY = 2, 8, 8, 32, 32
    x = jax.random.normal(kx, (B, D1, CX), dtype=jnp.float32)
    y = jax.random.normal(ky, (B, D2, CY), dtype=jnp.float32)
    out = jax.block_until_ready(pairwise_concat(x, y))
    ref = pairwise_concat_ref(x, y)
    assert out.shape == (B, D1, D2, CX + CY), out.shape
    assert jnp.allclose(out, ref), "mismatch vs reference (f32/f32)"

    # Test 2: mixed dtypes + rectangular d1/d2 (exercises output-dtype
    # promotion / explicit cast).
    x2 = jax.random.normal(kx, (2, 16, 16), dtype=jnp.bfloat16)
    y2 = jax.random.normal(ky, (2, 8, 48), dtype=jnp.float32)
    out2 = jax.block_until_ready(pairwise_concat(x2, y2))
    ref2 = pairwise_concat_ref(x2, y2)
    assert out2.shape == (2, 16, 8, 64), out2.shape
    assert out2.dtype == ref2.dtype, (out2.dtype, ref2.dtype)
    assert jnp.allclose(out2, ref2), "mismatch vs reference (bf16/f32)"

    # Test 3: tiny VMEM budget forces a multi-block tiled grid along d1.
    x3 = jax.random.normal(kx, (1, 16, 8), dtype=jnp.float32)
    y3 = jax.random.normal(ky, (1, 24, 8), dtype=jnp.float32)
    out3 = jax.block_until_ready(
        pairwise_concat(x3, y3, vmem_budget_bytes=256 * 1024))
    ref3 = pairwise_concat_ref(x3, y3)
    assert out3.shape == (1, 16, 24, 16), out3.shape
    assert jnp.allclose(out3, ref3), "mismatch vs reference (tiled grid)"

    print("KERNEL_OK")
</pallas_src>

<mosaic_0001>
module attributes {stable_mosaic.version = 11 : i64} {
  func.func @_pairwise_concat_kernel(%arg0: i32, %arg1: i32, %arg2: i32, %arg3: memref<1x8x32xf32, #tpu.memory_space<vmem>>, %arg4: memref<1x8x32xf32, #tpu.memory_space<vmem>>, %arg5: memref<1x8x8x64xf32, #tpu.memory_space<vmem>>) attributes {dimension_semantics = [#tpu.dimension_semantics<parallel>, #tpu.dimension_semantics<parallel>, #tpu.dimension_semantics<parallel>], iteration_bounds = array<i64: 2, 1, 1>, scalar_prefetch = 0 : i64, scratch_operands = 0 : i64, tpu.core_type = #tpu.core_type<tc>, window_params = [{transform_indices = @transform_0, window_bounds = array<i64: 1, 8, 32>}, {transform_indices = @transform_1, window_bounds = array<i64: 1, 8, 32>}, {transform_indices = @transform_2, window_bounds = array<i64: 1, 8, 8, 64>}]} {
    %c0 = arith.constant 0 : index
    %c0_0 = arith.constant 0 : index
    %c0_1 = arith.constant 0 : index
    %0 = vector.load %arg3[%c0, %c0_0, %c0_1] : memref<1x8x32xf32, #tpu.memory_space<vmem>>, vector<1x8x32xf32>
    %1 = vector.shape_cast %0 : vector<1x8x32xf32> to vector<8x32xf32>
    %c0_2 = arith.constant 0 : index
    %c0_3 = arith.constant 0 : index
    %c0_4 = arith.constant 0 : index
    %2 = vector.load %arg4[%c0_2, %c0_3, %c0_4] : memref<1x8x32xf32, #tpu.memory_space<vmem>>, vector<1x8x32xf32>
    %3 = vector.shape_cast %2 : vector<1x8x32xf32> to vector<8x32xf32>
    %4 = vector.shape_cast %1 : vector<8x32xf32> to vector<8x1x32xf32>
    %5 = vector.shape_cast %4 : vector<8x1x32xf32> to vector<8x1x32xf32>
    %6 = vector.broadcast %5 : vector<8x1x32xf32> to vector<8x8x32xf32>
    %c0_5 = arith.constant 0 : index
    %c0_6 = arith.constant 0 : index
    %c0_7 = arith.constant 0 : index
    %c0_8 = arith.constant 0 : index
    %7 = vector.load %arg5[%c0_5, %c0_6, %c0_7, %c0_8] : memref<1x8x8x64xf32, #tpu.memory_space<vmem>>, vector<1x8x8x32xf32>
    %8 = vector.shape_cast %7 : vector<1x8x8x32xf32> to vector<8x8x32xf32>
    %9 = vector.shape_cast %6 : vector<8x8x32xf32> to vector<1x8x8x32xf32>
    tpu.vector_store %arg5[%c0_5, %c0_6, %c0_7, %c0_8], %9 {strides = array<i32>} : memref<1x8x8x64xf32, #tpu.memory_space<vmem>>, vector<1x8x8x32xf32>,
    %10 = vector.shape_cast %3 : vector<8x32xf32> to vector<1x8x32xf32>
    %11 = vector.shape_cast %10 : vector<1x8x32xf32> to vector<1x8x32xf32>
    %12 = vector.broadcast %11 : vector<1x8x32xf32> to vector<8x8x32xf32>
    %c0_9 = arith.constant 0 : index
    %c0_10 = arith.constant 0 : index
    %c0_11 = arith.constant 0 : index
    %c32 = arith.constant 32 : index
    %13 = vector.load %arg5[%c0_9, %c0_10, %c0_11, %c32] : memref<1x8x8x64xf32, #tpu.memory_space<vmem>>, vector<1x8x8x32xf32>
    %14 = vector.shape_cast %13 : vector<1x8x8x32xf32> to vector<8x8x32xf32>
    %15 = vector.shape_cast %12 : vector<8x8x32xf32> to vector<1x8x8x32xf32>
    tpu.vector_store %arg5[%c0_9, %c0_10, %c0_11, %c32], %15 {strides = array<i32>} : memref<1x8x8x64xf32, #tpu.memory_space<vmem>>, vector<1x8x8x32xf32>,
    return
  }
  func.func @transform_0(%arg0: i32, %arg1: i32, %arg2: i32) -> (i32, i32, i32) {
    %c0_i32 = arith.constant 0 : i32
    %c0_i32_0 = arith.constant 0 : i32
    return %arg0, %arg1, %c0_i32 : i32, i32, i32
  }
  func.func @transform_1(%arg0: i32, %arg1: i32, %arg2: i32) -> (i32, i32, i32) {
    %c0_i32 = arith.constant 0 : i32
    %c0_i32_0 = arith.constant 0 : i32
    return %arg0, %arg2, %c0_i32 : i32, i32, i32
  }
  func.func @transform_2(%arg0: i32, %arg1: i32, %arg2: i32) -> (i32, i32, i32, i32) {
    %c0_i32 = arith.constant 0 : i32
    %c0_i32_0 = arith.constant 0 : i32
    return %arg0, %arg1, %arg2, %c0_i32 : i32, i32, i32, i32
  }
}

</mosaic_0001>

<llo_original>
// kernel: tpu_custom_call.1
$region0: #{tpu_custom_call.1}
  #allocation0 [shape = 'u32[]', space=smem, size = 0x4, offset = 0x4, fixed_abs, tag = 'smem constant byte address 0x4 - core index']
  #allocation1 [shape = 'u32[144,128]{1,0:T(1,128)}', space=vmem, size = 0x12000, scoped, tag = 'internal scratch']
  %s0 = inlined_call_operand.hbm [shape: f32[2,8,32], index: 0, kind: input, shape index: {}]
  %s1 = inlined_call_operand.hbm [shape: f32[2,8,32], index: 1, kind: input, shape index: {}]
  %s2 = inlined_call_operand.hbm [shape: f32[2,8,8,64], index: 2, kind: output, shape index: {}]
  %s3 = sld [smem:[#allocation0]]
  $region49: #{tpu_custom_call.1} parent=0
    _
  %s5 = ssub.s32 1, %s3
  %s6 = scalar_select 0, %s5, %s3
  $region1: #{tpu_custom_call.1} parent=0
    #allocation2 [shape = 'u8[8192]{0}', space=vmem, size = 0x2000, scoped, tag = 'input window, operand 0']
    #allocation3 [shape = 's32[2]{0}', space=sflag, size = 0x8, scoped, tag = 'scoped memory for tpu_custom_call.1']
    #allocation4 [shape = 's32[2]{0}', space=sflag, size = 0x8, scoped, tag = 'scoped memory for tpu_custom_call.1']
    #allocation5 [shape = 'u8[8192]{0}', space=vmem, size = 0x2000, scoped, tag = 'input window, operand 1']
    #allocation6 [shape = 's32[2]{0}', space=sflag, size = 0x8, scoped, tag = 'scoped memory for tpu_custom_call.1']
    #allocation7 [shape = 'u8[65536]{0}', space=vmem, size = 0x10000, scoped, tag = 'output window, operand 0']
    %7 = vsyncpa [#allocation3], 0
    %s8 = scalar_lea.sflag [#allocation3], 1
    %9 = vsyncpa %s8, 0
    %10 = vsyncpa [#allocation6], 0
    %s11 = scalar_lea.sflag [#allocation6], 1
    %12 = vsyncpa %s11, 0
    %13 = vsyncpa [#allocation4], 0
    %s14 = scalar_lea.sflag [#allocation4], 1
    %15 = vsyncpa %s14, 0
    loop: start=0, step=1, limit=4
    $region2: #{tpu_custom_call.1} parent=1 // loop_pre_header
      _
    $region3: #{tpu_custom_call.1} parent=1 // loop_header
      %s17 = sphi 0, %s21
      %p18 = scmp.ge.s32.totalorder %s17, 4
      %s24 = sphi 0, %s43
      %s25 = sphi 0, %s39
      %s26 = sphi 0, %s35
      %s27 = sphi 0, %s24
      %s28 = sphi 0, %s25
      %s29 = sphi 0, %s26
      %s30 = sphi 0, %s27
      %s31 = sphi 0, %s28
      %s32 = sphi 0, %s29
      %s48 = sphi 0, %s50
      %s51 = sphi 0, %s48
      %s52 = sphi 0, %s51
      %s68 = sphi 0, %s52
      %s76 = sphi 0, %s78
      %s79 = sphi 0, %s76
      %s80 = sphi 0, %s79
      %s96 = sphi 0, %s80
      %s106 = sphi 0, %s108
      %s109 = sphi 0, %s106
      %s110 = sphi 0, %s109
      %s126 = sphi 0, %s110
    $region4: #{tpu_custom_call.1} parent=1 // loop_header_branch
      %20 = sbr.rel (%p18) target = $region8
    $region5: #{tpu_custom_call.1} parent=1 // loop_body
      %s22 = ssub.s32 %s17, 1
      %s23 = ssub.s32 %s17, 2
      %s33 = sadd.s32 1, %s26
      %p34 = scmp.ge.s32.totalorder %s33, 1
      %s35 = scalar_select %p34, 0, %s33
      %s36 = sadd.s32 1, %s25
      %s37 = scalar_select %p34, %s36, %s25
      %p38 = scmp.ge.s32.totalorder %s37, 1
      %s39 = scalar_select %p38, 0, %s37
      %s40 = sadd.s32 1, %s24
      %s41 = scalar_select %p38, %s40, %s24
      %p42 = scmp.ge.s32.totalorder %s41, 2
      %s43 = scalar_select %p42, 0, %s41
      %s44 = ssub.s32 %s24, %s43
      %s45 = ssub.s32 %s25, %s39
      %s46 = sor.u32 %s44, %s45
      %p47 = scmp.eq.s32.totalorder %s46, 0
      %s49 = sadd.s32 %s48, 1
      %s50 = scalar_select %p47, %s48, %s49
      %p53 = pneg %p47
      %p54 = scmp.eq.s32.totalorder %s17, 1
      %p55 = por %p53, %p54
      %p56 = scmp.ne.s32.totalorder %s48, %s51
      %p57 = scmp.eq.s32.totalorder %s17, 0
      %p58 = por %p56, %p57
      %p59 = scmp.ne.s32.totalorder %s48, %s51
      %p60 = scmp.eq.s32.totalorder %s22, 1
      %p61 = por %p59, %p60
      %p62 = scmp.ne.s32.totalorder %s51, %s52
      %p63 = scmp.eq.s32.totalorder %s22, 0
      %p64 = por %p62, %p63
      %p65 = scmp.ne.s32.totalorder %s51, %s52
      %p66 = scmp.eq.s32.totalorder %s23, 1
      %p67 = por %p65, %p66
      %p69 = scmp.ne.s32.totalorder %s52, %s68
      %p70 = scmp.eq.s32.totalorder %s23, 0
      %p71 = por %p69, %p70
      %s72 = ssub.s32 %s24, %s43
      %s73 = ssub.s32 %s26, %s35
      %s74 = sor.u32 %s72, %s73
      %p75 = scmp.eq.s32.totalorder %s74, 0
      %s77 = sadd.s32 %s76, 1
      %s78 = scalar_select %p75, %s76, %s77
      %p81 = pneg %p75
      %p82 = scmp.eq.s32.totalorder %s17, 1
      %p83 = por %p81, %p82
      %p84 = scmp.ne.s32.totalorder %s76, %s79
      %p85 = scmp.eq.s32.totalorder %s17, 0
      %p86 = por %p84, %p85
      %p87 = scmp.ne.s32.totalorder %s76, %s79
      %p88 = scmp.eq.s32.totalorder %s22, 1
      %p89 = por %p87, %p88
      %p90 = scmp.ne.s32.totalorder %s79, %s80
      %p91 = scmp.eq.s32.totalorder %s22, 0
      %p92 = por %p90, %p91
      %p93 = scmp.ne.s32.totalorder %s79, %s80
      %p94 = scmp.eq.s32.totalorder %s23, 1
      %p95 = por %p93, %p94
      %p97 = scmp.ne.s32.totalorder %s80, %s96
      %p98 = scmp.eq.s32.totalorder %s23, 0
      %p99 = por %p97, %p98
      %s100 = ssub.s32 %s24, %s43
      %s101 = ssub.s32 %s25, %s39
      %s102 = sor.u32 %s100, %s101
      %s103 = ssub.s32 %s26, %s35
      %s104 = sor.u32 %s102, %s103
      %p105 = scmp.eq.s32.totalorder %s104, 0
      %s107 = sadd.s32 %s106, 1
      %s108 = scalar_select %p105, %s106, %s107
      %p111 = pneg %p105
      %p112 = scmp.eq.s32.totalorder %s17, 1
      %p113 = por %p111, %p112
      %p114 = scmp.ne.s32.totalorder %s106, %s109
      %p115 = scmp.eq.s32.totalorder %s17, 0
      %p116 = por %p114, %p115
      %p117 = scmp.ne.s32.totalorder %s106, %s109
      %p118 = scmp.eq.s32.totalorder %s22, 1
      %p119 = por %p117, %p118
      %p120 = scmp.ne.s32.totalorder %s109, %s110
      %p121 = scmp.eq.s32.totalorder %s22, 0
      %p122 = por %p120, %p121
      %p123 = scmp.ne.s32.totalorder %s109, %s110
      %p124 = scmp.eq.s32.totalorder %s23, 1
      %p125 = por %p123, %p124
      %p127 = scmp.ne.s32.totalorder %s110, %s126
      %p128 = scmp.eq.s32.totalorder %s23, 0
      %p129 = por %p127, %p128
      %p130 = scmp.le.s32.totalorder 1, %s17
      %p131 = scmp.lt.s32.totalorder %s17, 3
      %p132 = pnand %p130, %p131
      %p133 = pneg %p132
      // Predicated region
      $region9: #{tpu_custom_call.1} parent=5 // pred_check
        _
      $region10: #{tpu_custom_call.1} parent=5 // pred_check_branch
        %135 = sbr.rel (%p132) target = $region12
      $region11: #{tpu_custom_call.1} parent=5 // pred_region
        %s136 = ssub.s32 %s17, 1
      $region12: #{tpu_custom_call.1} parent=5 // pred_fallthru
        _
      %p137 = scmp.lt.s32.totalorder %s17, 2
      // Predicated region
      $region13: #{tpu_custom_call.1} parent=5 // pred_check
        %p138 = pneg %p137
      $region14: #{tpu_custom_call.1} parent=5 // pred_check_branch
        %140 = sbr.rel (%p138) target = $region16
      $region15: #{tpu_custom_call.1} parent=5 // pred_region
        // Predicated region
        $region17: #{tpu_custom_call.1} parent=15 // pred_check
          %p141 = pneg %p58
        $region18: #{tpu_custom_call.1} parent=15 // pred_check_branch
          %143 = sbr.rel (%p141) target = $region20
        $region19: #{tpu_custom_call.1} parent=15 // pred_region
          %s144 = sand.u32 %s48, 1
          %s145 = scalar_lea.sflag [#allocation3], %s144
          %s146 = sand.u32 %s48, 1
          %s147 = smul.addr %s146, 8
          %s148 = scalar_lea.vmem [#allocation2], %s147
          %s150 = ssub.s32 128, 128
          %151 = vsyncadd %s145, %s150
          %s152 = sadd.s32 %s25, %s24
          %s153 = smul.addr %s152, 128
          %s154 = scalar_lea.hbm %s0, %s153
          %s156 = sshll.u32 %s148, 4
          %s157 = int_to_ptr.vmem [resolvable:$true] %s156
          %159 = dma.hbm_to_vmem [thread:$0]  %s154, 128, %s157, %s145
        $region20: #{tpu_custom_call.1} parent=15 // pred_fallthru
          _
        // Predicated region
        $region21: #{tpu_custom_call.1} parent=15 // pred_check
          %p160 = pneg %p86
        $region22: #{tpu_custom_call.1} parent=15 // pred_check_branch
          %162 = sbr.rel (%p160) target = $region24
        $region23: #{tpu_custom_call.1} parent=15 // pred_region
          %s163 = sand.u32 %s76, 1
          %s164 = scalar_lea.sflag [#allocation6], %s163
          %s165 = sand.u32 %s76, 1
          %s166 = smul.addr %s165, 8
          %s167 = scalar_lea.vmem [#allocation5], %s166
          %s169 = ssub.s32 128, 128
          %170 = vsyncadd %s164, %s169
          %s171 = sadd.s32 %s26, %s24
          %s172 = smul.addr %s171, 128
          %s173 = scalar_lea.hbm %s1, %s172
          %s175 = sshll.u32 %s167, 4
          %s176 = int_to_ptr.vmem [resolvable:$true] %s175
          %178 = dma.hbm_to_vmem [thread:$0]  %s173, 128, %s176, %s164
        $region24: #{tpu_custom_call.1} parent=15 // pred_fallthru
          _
      $region16: #{tpu_custom_call.1} parent=5 // pred_fallthru
        _
      %p179 = scmp.le.s32.totalorder 1, %s17
      %p180 = scmp.lt.s32.totalorder %s17, 3
      %p181 = pnand %p179, %p180
      %p182 = pneg %p181
      // Predicated region
      $region25: #{tpu_custom_call.1} parent=5 // pred_check
        _
      $region26: #{tpu_custom_call.1} parent=5 // pred_check_branch
        %184 = sbr.rel (%p181) target = $region28
      $region27: #{tpu_custom_call.1} parent=5 // pred_region
        %s185 = ssub.s32 %s17, 1
        %s186 = sand.u32 %s51, 1
        %s187 = scalar_lea.sflag [#allocation3], %s186
        %s188 = sand.u32 %s51, 1
        %s189 = smul.addr %s188, 8
        %s190 = scalar_lea.vmem [#allocation2], %s189
        // Predicated region
        $region29: #{tpu_custom_call.1} parent=27 // pred_check
          %p191 = pneg %p64
        $region30: #{tpu_custom_call.1} parent=27 // pred_check_branch
          %193 = sbr.rel (%p191) target = $region32
        $region31: #{tpu_custom_call.1} parent=27 // pred_region
          %194 = dma.done %s187, 128
        $region32: #{tpu_custom_call.1} parent=27 // pred_fallthru
          _
        %s195 = sand.u32 %s79, 1
        %s196 = scalar_lea.sflag [#allocation6], %s195
        %s197 = sand.u32 %s79, 1
        %s198 = smul.addr %s197, 8
        %s199 = scalar_lea.vmem [#allocation5], %s198
        // Predicated region
        $region33: #{tpu_custom_call.1} parent=27 // pred_check
          %p200 = pneg %p92
        $region34: #{tpu_custom_call.1} parent=27 // pred_check_branch
          %202 = sbr.rel (%p200) target = $region36
        $region35: #{tpu_custom_call.1} parent=27 // pred_region
          %203 = dma.done %s196, 128
        $region36: #{tpu_custom_call.1} parent=27 // pred_fallthru
          _
        %s204 = sand.u32 %s51, 1
        %s205 = scalar_lea.sflag [#allocation3], %s204
        %s206 = sand.u32 %s51, 1
        %s207 = smul.addr %s206, 8
        %s208 = scalar_lea.vmem [#allocation2], %s207
        %p209 = pneg %p64
        %p210 = pneg %p61
        %s211 = sand.u32 %s79, 1
        %s212 = scalar_lea.sflag [#allocation6], %s211
        %s213 = sand.u32 %s79, 1
        %s214 = smul.addr %s213, 8
        %s215 = scalar_lea.vmem [#allocation5], %s214
        %p216 = pneg %p92
        %p217 = pneg %p89
        %p218 = pneg %p122
        %p219 = pneg %p119
        %s220 = sand.u32 %s109, 1
        %s221 = scalar_lea.sflag [#allocation4], %s220
        %s222 = sand.u32 %s109, 1
        %s223 = smul.addr %s222, 64
        %s224 = scalar_lea.vmem [#allocation7], %s223
        %s225 = smul.u32 8, %s28
        %v226 = vld [vmem:[%s190] sm:$0xff]
        %v227 = vld [vmem:[%s199] sm:$0xff]
        %v229 = vcombine.high %v226, %v226
        %v231 = vunpack.c.l.s4 1966171168
        %v232 = vunpack.c.0.s8 %v231
        %v233 = vlaneseq
        %v234 = vshrl.u32 %v233, 7
        %v235 = vsub.s32 %v232, %v234
        %v236 = vrot.slane %v226, %v235
        %v238 = vunpack.c.l.s4 1966171168
        %v239 = vunpack.c.0.s8 %v238
        %v240 = vlaneseq
        %v241 = vshrl.u32 %v240, 7
        %v242 = vsub.s32 %v239, %v241
        %v243 = vrot.slane %v229, %v242
        %v244 = vcombine.high %v236, %v236
        %v245 = vcombine.high %v243, %v243
        %v247 = vunpack.c.l.s4 1966171168
        %v248 = vunpack.c.0.s8 %v247
        %v249 = vlaneseq
        %v250 = vshrl.u32 %v249, 7
        %v251 = vsub.s32 %v248, %v250
        %v252 = vrot.slane %v236, %v251
        %v254 = vunpack.c.l.s4 1966171168
        %v255 = vunpack.c.0.s8 %v254
        %v256 = vlaneseq
        %v257 = vshrl.u32 %v256, 7
        %v258 = vsub.s32 %v255, %v257
        %v259 = vrot.slane %v243, %v258
        %v261 = vunpack.c.l.s4 1966171168
        %v262 = vunpack.c.0.s8 %v261
        %v263 = vlaneseq
        %v264 = vshrl.u32 %v263, 7
        %v265 = vsub.s32 %v262, %v264
        %v266 = vrot.slane %v244, %v265
        %v268 = vunpack.c.l.s4 1966171168
        %v269 = vunpack.c.0.s8 %v268
        %v270 = vlaneseq
        %v271 = vshrl.u32 %v270, 7
        %v272 = vsub.s32 %v269, %v271
        %v273 = vrot.slane %v245, %v272
        %v274 = vcombine.high %v252, %v252
        %v275 = vcombine.high %v259, %v259
        %v276 = vcombine.high %v266, %v266
        %v277 = vcombine.high %v273, %v273
        %v278 = vlaneseq
        %v279 = vshrl.u32 %v278, 7
        %v280 = vsub.s32 0, %v279
        %v281 = vrot.slane %v252, %v280
        %v282 = vlaneseq
        %v283 = vshrl.u32 %v282, 7
        %v284 = vsub.s32 0, %v283
        %v285 = vrot.slane %v266, %v284
        %v286 = vlaneseq
        %v287 = vshrl.u32 %v286, 7
        %v288 = vsub.s32 0, %v287
        %v289 = vrot.slane %v274, %v288
        %v290 = vlaneseq
        %v291 = vshrl.u32 %v290, 7
        %v292 = vsub.s32 0, %v291
        %v293 = vrot.slane %v276, %v292
        %v294 = vlaneseq
        %v295 = vshrl.u32 %v294, 7
        %v296 = vsub.s32 0, %v295
        %v297 = vrot.slane %v259, %v296
        %v298 = vlaneseq
        %v299 = vshrl.u32 %v298, 7
        %v300 = vsub.s32 0, %v299
        %v301 = vrot.slane %v273, %v300
        %v302 = vlaneseq
        %v303 = vshrl.u32 %v302, 7
        %v304 = vsub.s32 0, %v303
        %v305 = vrot.slane %v275, %v304
        %v306 = vlaneseq
        %v307 = vshrl.u32 %v306, 7
        %v308 = vsub.s32 0, %v307
        %v309 = vrot.slane %v277, %v308
        %vm318 = vcmask 261120
        %319 = vst.msk [vmem:[%s224] sm:$0xff] %vm318, %v281
        %320 = vst.msk [vmem:[%s224 + $0x8] sm:$0xff] %vm318, %v285
        %321 = vst.msk [vmem:[%s224 + $0x10] sm:$0xff] %vm318, %v289
        %322 = vst.msk [vmem:[%s224 + $0x18] sm:$0xff] %vm318, %v293
        %323 = vst.msk [vmem:[%s224 + $0x20] sm:$0xff] %vm318, %v297
        %324 = vst.msk [vmem:[%s224 + $0x28] sm:$0xff] %vm318, %v301
        %325 = vst.msk [vmem:[%s224 + $0x30] sm:$0xff] %vm318, %v305
        %326 = vst.msk [vmem:[%s224 + $0x38] sm:$0xff] %vm318, %v309
        %328 = vrot.lane.b32.xlu0 %v227, 32
        %v329 = vpop.permute.xlu0 %328
        %vm331 = vcmask 523520
        %332 = vst.msk [vmem:[%s224] sm:$0xff] %vm331, %v329
        %333 = vst.msk [vmem:[%s224 + $0x8] sm:$0xff] %vm331, %v329
        %334 = vst.msk [vmem:[%s224 + $0x10] sm:$0xff] %vm331, %v329
        %335 = vst.msk [vmem:[%s224 + $0x18] sm:$0xff] %vm331, %v329
        %336 = vst.msk [vmem:[%s224 + $0x20] sm:$0xff] %vm331, %v329
        %337 = vst.msk [vmem:[%s224 + $0x28] sm:$0xff] %vm331, %v329
        %338 = vst.msk [vmem:[%s224 + $0x30] sm:$0xff] %vm331, %v329
        %339 = vst.msk [vmem:[%s224 + $0x38] sm:$0xff] %vm331, %v329
        %s340 = sand.u32 %s109, 1
        %s341 = scalar_lea.sflag [#allocation4], %s340
        %s342 = sand.u32 %s109, 1
        %s343 = smul.addr %s342, 64
        %s344 = scalar_lea.vmem [#allocation7], %s343
        // Predicated region
        $region37: #{tpu_custom_call.1} parent=27 // pred_check
          %p345 = pneg %p119
        $region38: #{tpu_custom_call.1} parent=27 // pred_check_branch
          %347 = sbr.rel (%p345) target = $region40
        $region39: #{tpu_custom_call.1} parent=27 // pred_region
          %s348 = smul.u32 8, %s28
          %s350 = ssub.s32 1024, 1024
          %351 = vsyncadd %s341, %s350
          %s352 = sadd.s32 %s29, %s348
          %s353 = smul.addr %s27, 8
          %s354 = sadd.s32 %s352, %s353
          %s355 = smul.addr %s354, 128
          %s356 = scalar_lea.hbm %s2, %s355
          %s357 = sshll.u32 %s344, 4
          %s358 = int_to_ptr.vmem [resolvable:$true] %s357
          %363 = dma.vmem_to_hbm [thread:$0]  %s358, 1024, %s356, %s341, 128, 128, 8
        $region40: #{tpu_custom_call.1} parent=27 // pred_fallthru
          _
      $region28: #{tpu_custom_call.1} parent=5 // pred_fallthru
        _
      %p364 = scmp.le.s32.totalorder 2, %s17
      // Predicated region
      $region41: #{tpu_custom_call.1} parent=5 // pred_check
        %p365 = pneg %p364
      $region42: #{tpu_custom_call.1} parent=5 // pred_check_branch
        %367 = sbr.rel (%p365) target = $region44
      $region43: #{tpu_custom_call.1} parent=5 // pred_region
        %s368 = ssub.s32 %s17, 2
        // Predicated region
        $region45: #{tpu_custom_call.1} parent=43 // pred_check
          %p369 = pneg %p125
        $region46: #{tpu_custom_call.1} parent=43 // pred_check_branch
          %371 = sbr.rel (%p369) target = $region48
        $region47: #{tpu_custom_call.1} parent=43 // pred_region
          %s372 = sand.u32 %s110, 1
          %s373 = scalar_lea.sflag [#allocation4], %s372
          %s374 = sand.u32 %s110, 1
          %s375 = smul.addr %s374, 64
          %s376 = scalar_lea.vmem [#allocation7], %s375
          %377 = dma.done %s373, 1024
        $region48: #{tpu_custom_call.1} parent=43 // pred_fallthru
          _
      $region44: #{tpu_custom_call.1} parent=5 // pred_fallthru
        _
    $region6: #{tpu_custom_call.1} parent=1 // loop_footer
      %s21 = sadd.s32 1, %s17
    $region7: #{tpu_custom_call.1} parent=1 // loop_footer_branch
      %16 = sbr.rel target = $region3
    $region8: #{tpu_custom_call.1} parent=1 // loop_exit
      _
    %378 = vsyncpa [#allocation3], 1
    %s379 = scalar_lea.sflag [#allocation3], 1
    %380 = vsyncpa %s379, 1
    %381 = vsyncpa [#allocation6], 1
    %s382 = scalar_lea.sflag [#allocation6], 1
    %383 = vsyncpa %s382, 1
    %384 = vsyncpa [#allocation4], 1
    %s385 = scalar_lea.sflag [#allocation4], 1
    %386 = vsyncpa %s385, 1

</llo_original>
